<compile_context>
chip_gen: v7x
topology: tpu7x:2x2x1
jax: 0.10.0
libtpu: 0.0.40
codegen_flags: <defaults>
</compile_context>

<pallas_src>
import functools

import jax
import jax.numpy as jnp
from jax.experimental import pallas as pl
from jax.experimental.pallas import tpu as pltpu

_LANES = 512                          # lane-dense last dim (multiple of 128)
_SUB = 8                              # sublane group size
_NUM_CORES = 2                        # v7x has 2 TCs; sequential (harmless) on v5e/v6e
_TARGET_STEP_BYTES = 2 * 1024 * 1024  # ~2 MiB of each input per grid step


def _round_up(x, m):
    return ((x + m - 1) // m) * m


@functools.lru_cache(maxsize=1)
def _vmem_budget_bytes():
    try:
        return int(pltpu.get_tpu_info().vmem_capacity_bytes)
    except Exception:
        return 64 * 1024 * 1024       # conservative fallback (v7x per-core VMEM)


def _kl_loss_kernel(zm_ref, zv_ref, out_ref, acc_ref):
    # zm_ref, zv_ref: VMEM (block_rows, _LANES) tiles (storage dtype)
    # out_ref:        VMEM (_SUB, _LANES) f32 per-core partial-sum block
    # acc_ref:        VMEM (_SUB, _LANES) f32 resident accumulator scratch
    i = pl.program_id(1)              # row-block index within this core's slice

    @pl.when(i == 0)
    def _init():
        acc_ref[...] = jnp.zeros_like(acc_ref)

    zm = zm_ref[...].astype(jnp.float32)
    zv = zv_ref[...].astype(jnp.float32)
    # Hot path: exp on the EUP, mul/add/sub on the VPU.  The "-1.0" term is
    # hoisted to the wrapper (every accumulated element - padded or not -
    # contributes exactly one "+1" which the wrapper subtracts exactly).
    contrib = jnp.exp(zv) + zm * zm - zv
    nsub = contrib.shape[0] // _SUB
    # Fold the tile into a fixed (8, _LANES) partial: pure VPU vreg adds,
    # no per-step accumulator traffic proportional to the tile size.
    acc_ref[...] += contrib.reshape(nsub, _SUB, _LANES).sum(axis=0)

    @pl.when(i == pl.num_programs(1) - 1)
    def _finalize():
        out_ref[...] = acc_ref[...]   # lane-dense dump; final reduce in wrapper


def _plan_tiling(total, itemsize, max_block_rows):
    """Pick (block_rows, blocks_per_core, rows_padded) for a (rows, _LANES) slab."""
    budget = _vmem_budget_bytes()
    # 2 inputs x 2 pipeline buffers x block_rows x _LANES x itemsize must fit
    # in roughly half of VMEM (leave room for temporaries / internal scratch).
    cap_rows = (budget // 2 - 2 * 1024 * 1024) // (4 * _LANES * itemsize)
    cap_rows = max((cap_rows // _SUB) * _SUB, _SUB)
    if max_block_rows is not None:
        cap_rows = max(min(cap_rows, _round_up(int(max_block_rows), _SUB)), _SUB)
    target_rows = (_TARGET_STEP_BYTES // (_LANES * itemsize)) // _SUB * _SUB
    target_rows = max(min(target_rows, cap_rows), _SUB)

    # ---- fast path: the flat input tiles the slab exactly -> no pad copy ----
    if total % _LANES == 0:
        rows = total // _LANES
        if rows % (_SUB * _NUM_CORES) == 0:
            per_core = rows // _NUM_CORES
            m = per_core // _SUB          # block_rows = _SUB*(m//d) for d | m
            best = None
            d = 1
            while d * d <= m:
                if m % d == 0:
                    for dd in (d, m // d):
                        br = _SUB * (m // dd)
                        if br <= cap_rows:
                            score = abs(br - target_rows)
                            if best is None or score < best[0]:
                                best = (score, br, dd)
                d += 1
            if best is not None:
                _, block_rows, blocks_per_core = best
                # Reject pathological divisor structures (way too many tiny
                # steps) - one bounded pad pass is cheaper in that case.
                if blocks_per_core <= 2 * max(pl.cdiv(per_core, target_rows), 1):
                    return block_rows, blocks_per_core, rows

    # ---- general path: minimal padding, bounded by a few 8-row groups -------
    rows_min = _round_up(max(pl.cdiv(total, _LANES), 1), _SUB * _NUM_CORES)
    per_core = rows_min // _NUM_CORES
    blocks_per_core = max(pl.cdiv(per_core, target_rows), 1)
    block_rows = _round_up(pl.cdiv(per_core, blocks_per_core), _SUB)
    return block_rows, blocks_per_core, _NUM_CORES * blocks_per_core * block_rows


@functools.partial(jax.jit, static_argnums=(0,), static_argnames=("max_block_rows",))
def kl_loss(shape, z_mean, z_var, *, max_block_rows=None):
    """Pallas implementation of KLLoss.forward(shape, z_mean, z_var)."""
    n = float(shape[0] * shape[1] * shape[2])
    batch = z_mean.shape[0]
    scale = 1.0 / (n * batch)

    total = z_mean.size
    itemsize = max(z_mean.dtype.itemsize, z_var.dtype.itemsize)
    block_rows, blocks_per_core, rows_padded = _plan_tiling(
        total, itemsize, max_block_rows)
    padded_total = rows_padded * _LANES

    def to_slab(x):
        x = x.reshape(-1)                        # free (row-major bitcast)
        if padded_total != total:                # ragged tail: bounded, uncommon
            x = jnp.pad(x, (0, padded_total - total))
        return x.reshape(rows_padded, _LANES)    # keep storage dtype (bf16 stays bf16)

    zm_slab = to_slab(z_mean)
    zv_slab = to_slab(z_var)

    # VMEM budget: double-buffered input tiles + out block + acc + temp headroom.
    in_bytes = 2 * block_rows * _LANES * (z_mean.dtype.itemsize + z_var.dtype.itemsize)
    small_bytes = 3 * _SUB * _LANES * 4
    temp_headroom = 4 * block_rows * _LANES * 4 + 4 * 1024 * 1024
    vmem_limit = int(min(max(in_bytes + small_bytes + temp_headroom,
                             16 * 1024 * 1024),
                         _vmem_budget_bytes()))

    cost = pl.CostEstimate(
        flops=5 * padded_total,
        transcendentals=padded_total,
        bytes_accessed=padded_total * (zm_slab.dtype.itemsize + zv_slab.dtype.itemsize)
        + _NUM_CORES * _SUB * _LANES * 4,
    )

    row_block = lambda c, i: (c * blocks_per_core + i, 0)

    partials = pl.pallas_call(
        _kl_loss_kernel,
        out_shape=jax.ShapeDtypeStruct((_NUM_CORES * _SUB, _LANES), jnp.float32),
        grid_spec=pltpu.PrefetchScalarGridSpec(
            num_scalar_prefetch=0,
            grid=(_NUM_CORES, blocks_per_core),
            in_specs=[
                pl.BlockSpec((block_rows, _LANES), row_block),   # z_mean slab
                pl.BlockSpec((block_rows, _LANES), row_block),   # z_var slab
            ],
            out_specs=pl.BlockSpec((_SUB, _LANES), lambda c, i: (c, 0)),
            scratch_shapes=[pltpu.VMEM((_SUB, _LANES), jnp.float32)],
        ),
        compiler_params=pltpu.CompilerParams(
            dimension_semantics=("parallel", "arbitrary"),
            vmem_limit_bytes=vmem_limit,
        ),
        cost_estimate=cost,
    )(zm_slab, zv_slab)

    # Undo the "-1.0" hoist: every output element accumulated exactly `count`
    # tile elements (zero-padded ones contributing exp(0) = 1 apiece), so
    # subtracting `count` per element before the tiny final reduce is exact
    # and avoids large-number cancellation.
    count = float(blocks_per_core * (block_rows // _SUB))
    return jnp.sum(partials - count) * scale


def kl_loss_ref(shape, z_mean, z_var):
    n = shape[0] * shape[1] * shape[2]
    zm = z_mean.astype(jnp.float32)
    zv = z_var.astype(jnp.float32)
    per_sample = jnp.sum(jnp.exp(zv) + jnp.square(zm) - 1.0 - zv, axis=-1)
    return jnp.mean(per_sample / n)


if __name__ == "__main__":
    key = jax.random.PRNGKey(0)
    k1, k2, k3, k4, k5, k6 = jax.random.split(key, 6)

    # "shape" of the reconstructed tensor (C, H, W); small module-consistent sizes.
    shape = (4, 16, 16)

    # 1) Small latent stats [batch=2, latent=32] (ragged -> bounded-pad path).
    z_mean = jax.random.normal(k1, (2, 32), dtype=jnp.float32)
    z_var = jax.random.normal(k2, (2, 32), dtype=jnp.float32)   # log-variance
    out = jax.block_until_ready(kl_loss(shape, z_mean, z_var))
    ref = kl_loss_ref(shape, z_mean, z_var)
    assert jnp.allclose(out, ref, rtol=1e-5, atol=1e-6), (out, ref)

    # 2) No-pad fast path + multi-step reduction grid (tiny blocks forced).
    z_mean2 = jax.random.normal(k3, (64, 512), dtype=jnp.float32)
    z_var2 = jax.random.normal(k4, (64, 512), dtype=jnp.float32)
    out2 = jax.block_until_ready(kl_loss(shape, z_mean2, z_var2, max_block_rows=8))
    ref2 = kl_loss_ref(shape, z_mean2, z_var2)
    assert jnp.allclose(out2, ref2, rtol=1e-4, atol=1e-5), (out2, ref2)

    # 3) Ragged last-dim (pad path with bounded waste).
    z_mean3 = jax.random.normal(k5, (8, 600), dtype=jnp.float32)
    z_var3 = jax.random.normal(k6, (8, 600), dtype=jnp.float32)
    out3 = jax.block_until_ready(kl_loss(shape, z_mean3, z_var3))
    ref3 = kl_loss_ref(shape, z_mean3, z_var3)
    assert jnp.allclose(out3, ref3, rtol=1e-5, atol=1e-5), (out3, ref3)

    # 4) bf16 storage path: bf16 read from HBM, f32 compute/accumulate in-kernel.
    zm_bf = z_mean2.astype(jnp.bfloat16)
    zv_bf = z_var2.astype(jnp.bfloat16)
    out4 = jax.block_until_ready(kl_loss(shape, zm_bf, zv_bf))
    ref4 = kl_loss_ref(shape, zm_bf, zv_bf)
    assert jnp.allclose(out4, ref4, rtol=1e-2, atol=1e-2), (out4, ref4)

    print("KERNEL_OK")
</pallas_src>

<mosaic_0001>
module attributes {stable_mosaic.version = 11 : i64} {
  func.func @_kl_loss_kernel(%arg0: i32, %arg1: i32, %arg2: memref<8x512xf32, #tpu.memory_space<vmem>>, %arg3: memref<8x512xf32, #tpu.memory_space<vmem>>, %arg4: memref<8x512xf32, #tpu.memory_space<vmem>>, %arg5: memref<8x512xf32, #tpu.memory_space<vmem>>) attributes {dimension_semantics = [#tpu.dimension_semantics<parallel>, #tpu.dimension_semantics<arbitrary>], iteration_bounds = array<i64: 2, 1>, scalar_prefetch = 0 : i64, scratch_operands = 1 : i64, tpu.core_type = #tpu.core_type<tc>, window_params = [{transform_indices = @transform_0, window_bounds = array<i64: 8, 512>}, {transform_indices = @transform_1, window_bounds = array<i64: 8, 512>}, {transform_indices = @transform_2, window_bounds = array<i64: 8, 512>}]} {
    %c0_i32 = arith.constant 0 : i32
    %0 = arith.cmpi eq, %arg1, %c0_i32 : i32
    %1 = arith.extui %0 : i1 to i32
    %c0_i32_0 = arith.constant 0 : i32
    %2 = arith.cmpi ne, %1, %c0_i32_0 : i32
    scf.if %2 {
      %cst_10 = arith.constant 0.000000e+00 : f32
      %17 = vector.broadcast %cst_10 : f32 to vector<8x512xf32>
      %c0_11 = arith.constant 0 : index
      %c0_12 = arith.constant 0 : index
      %18 = vector.load %arg5[%c0_11, %c0_12] : memref<8x512xf32, #tpu.memory_space<vmem>>, vector<8x512xf32>
      tpu.vector_store %arg5[%c0_11, %c0_12], %17 {strides = array<i32>} : memref<8x512xf32, #tpu.memory_space<vmem>>, vector<8x512xf32>,
    } else {
    }
    %c0 = arith.constant 0 : index
    %c0_1 = arith.constant 0 : index
    %3 = vector.load %arg2[%c0, %c0_1] : memref<8x512xf32, #tpu.memory_space<vmem>>, vector<8x512xf32>
    %c0_2 = arith.constant 0 : index
    %c0_3 = arith.constant 0 : index
    %4 = vector.load %arg3[%c0_2, %c0_3] : memref<8x512xf32, #tpu.memory_space<vmem>>, vector<8x512xf32>
    %5 = math.exp %4 : vector<8x512xf32>
    %6 = arith.mulf %3, %3 : vector<8x512xf32>
    %7 = arith.addf %5, %6 : vector<8x512xf32>
    %8 = arith.subf %7, %4 : vector<8x512xf32>
    %c0_4 = arith.constant 0 : index
    %c0_5 = arith.constant 0 : index
    %9 = vector.load %arg5[%c0_4, %c0_5] : memref<8x512xf32, #tpu.memory_space<vmem>>, vector<8x512xf32>
    %10 = vector.shape_cast %8 : vector<8x512xf32> to vector<1x8x512xf32>
    %cst = arith.constant dense<0.000000e+00> : vector<8x512xf32>
    %11 = vector.multi_reduction <add>, %10, %cst [0] : vector<1x8x512xf32> to vector<8x512xf32>
    %12 = arith.addf %9, %11 : vector<8x512xf32>
    %c0_6 = arith.constant 0 : index
    %c0_7 = arith.constant 0 : index
    %13 = vector.load %arg5[%c0_6, %c0_7] : memref<8x512xf32, #tpu.memory_space<vmem>>, vector<8x512xf32>
    tpu.vector_store %arg5[%c0_6, %c0_7], %12 {strides = array<i32>} : memref<8x512xf32, #tpu.memory_space<vmem>>, vector<8x512xf32>,
    %c0_i32_8 = arith.constant 0 : i32
    %14 = arith.cmpi eq, %arg1, %c0_i32_8 : i32
    %15 = arith.extui %14 : i1 to i32
    %c0_i32_9 = arith.constant 0 : i32
    %16 = arith.cmpi ne, %15, %c0_i32_9 : i32
    scf.if %16 {
      %c0_10 = arith.constant 0 : index
      %c0_11 = arith.constant 0 : index
      %17 = vector.load %arg5[%c0_10, %c0_11] : memref<8x512xf32, #tpu.memory_space<vmem>>, vector<8x512xf32>
      %c0_12 = arith.constant 0 : index
      %c0_13 = arith.constant 0 : index
      %18 = vector.load %arg4[%c0_12, %c0_13] : memref<8x512xf32, #tpu.memory_space<vmem>>, vector<8x512xf32>
      tpu.vector_store %arg4[%c0_12, %c0_13], %17 {strides = array<i32>} : memref<8x512xf32, #tpu.memory_space<vmem>>, vector<8x512xf32>,
    } else {
    }
    return
  }
  func.func @transform_0(%arg0: i32, %arg1: i32) -> (i32, i32) {
    %c1_i32 = arith.constant 1 : i32
    %0 = arith.muli %arg0, %c1_i32 : i32
    %1 = arith.addi %0, %arg1 : i32
    %c0_i32 = arith.constant 0 : i32
    %c0_i32_0 = arith.constant 0 : i32
    return %1, %c0_i32 : i32, i32
  }
  func.func @transform_1(%arg0: i32, %arg1: i32) -> (i32, i32) {
    %c1_i32 = arith.constant 1 : i32
    %0 = arith.muli %arg0, %c1_i32 : i32
    %1 = arith.addi %0, %arg1 : i32
    %c0_i32 = arith.constant 0 : i32
    %c0_i32_0 = arith.constant 0 : i32
    return %1, %c0_i32 : i32, i32
  }
  func.func @transform_2(%arg0: i32, %arg1: i32) -> (i32, i32) {
    %c0_i32 = arith.constant 0 : i32
    %c0_i32_0 = arith.constant 0 : i32
    return %arg0, %c0_i32 : i32, i32
  }
}

</mosaic_0001>

<llo_original>
// kernel: kl_loss.1
$region0: #{kl_loss.1}
  #allocation0 [shape = 'u32[]', space=smem, size = 0x4, offset = 0x4, fixed_abs, tag = 'smem constant byte address 0x4 - core index']
  #allocation1 [shape = 'u32[144,128]{1,0:T(1,128)}', space=vmem, size = 0x12000, scoped, tag = 'internal scratch']
  #allocation2 [shape = 'f32[8,512]{1,0:T(8,128)}', space=vmem, size = 0x4000, scoped, tag = 'scratch operand']
  %s0 = inlined_call_operand.vmem [shape: f32[16,512], index: 0, kind: input, shape index: {}]
  %s1 = inlined_call_operand.vmem [shape: f32[16,512], index: 1, kind: input, shape index: {}]
  %s2 = inlined_call_operand.vmem [shape: f32[16,512], index: 2, kind: output, shape index: {}]
  %s3 = sld [smem:[#allocation0]]
  $region49: #{kl_loss.1} parent=0
    _
  %s5 = ssub.s32 1, %s3
  %s6 = scalar_select 0, %s5, %s3
  loop: start=0, step=1, limit=4
  $region2: #{kl_loss.1} parent=0 // loop_pre_header
    _
  $region3: #{kl_loss.1} parent=0 // loop_header
    %s8 = sphi 0, %s12
    %p9 = scmp.ge.s32.totalorder %s8, 4
    %s15 = sphi 0, %s27
    %s16 = sphi 0, %s23
    %s17 = sphi 0, %s15
    %s18 = sphi 0, %s16
    %s19 = sphi 0, %s17
    %s20 = sphi 0, %s18
    %s32 = sphi 0, %s34
    %s35 = sphi 0, %s32
    %s36 = sphi 0, %s35
    %s52 = sphi 0, %s36
    %s60 = sphi 0, %s62
    %s63 = sphi 0, %s60
    %s64 = sphi 0, %s63
    %s80 = sphi 0, %s64
    %s86 = sphi 0, %s88
    %s89 = sphi 0, %s86
    %s90 = sphi 0, %s89
    %s106 = sphi 0, %s90
  $region4: #{kl_loss.1} parent=0 // loop_header_branch
    %11 = sbr.rel (%p9) target = $region8
  $region5: #{kl_loss.1} parent=0 // loop_body
    %s13 = ssub.s32 %s8, 1
    %s14 = ssub.s32 %s8, 2
    %s21 = sadd.s32 1, %s16
    %p22 = scmp.ge.s32.totalorder %s21, 1
    %s23 = scalar_select %p22, 0, %s21
    %s24 = sadd.s32 1, %s15
    %s25 = scalar_select %p22, %s24, %s15
    %p26 = scmp.ge.s32.totalorder %s25, 2
    %s27 = scalar_select %p26, 0, %s25
    %s28 = sadd.s32 %s15, %s16
    %s29 = sadd.s32 %s27, %s23
    %s30 = ssub.s32 %s28, %s29
    %p31 = scmp.eq.s32.totalorder %s30, 0
    %s33 = sadd.s32 %s32, 1
    %s34 = scalar_select %p31, %s32, %s33
    %p37 = pneg %p31
    %p38 = scmp.eq.s32.totalorder %s8, 1
    %p39 = por %p37, %p38
    %p40 = scmp.ne.s32.totalorder %s32, %s35
    %p41 = scmp.eq.s32.totalorder %s8, 0
    %p42 = por %p40, %p41
    %p43 = scmp.ne.s32.totalorder %s32, %s35
    %p44 = scmp.eq.s32.totalorder %s13, 1
    %p45 = por %p43, %p44
    %p46 = scmp.ne.s32.totalorder %s35, %s36
    %p47 = scmp.eq.s32.totalorder %s13, 0
    %p48 = por %p46, %p47
    %p49 = scmp.ne.s32.totalorder %s35, %s36
    %p50 = scmp.eq.s32.totalorder %s14, 1
    %p51 = por %p49, %p50
    %p53 = scmp.ne.s32.totalorder %s36, %s52
    %p54 = scmp.eq.s32.totalorder %s14, 0
    %p55 = por %p53, %p54
    %s56 = sadd.s32 %s15, %s16
    %s57 = sadd.s32 %s27, %s23
    %s58 = ssub.s32 %s56, %s57
    %p59 = scmp.eq.s32.totalorder %s58, 0
    %s61 = sadd.s32 %s60, 1
    %s62 = scalar_select %p59, %s60, %s61
    %p65 = pneg %p59
    %p66 = scmp.eq.s32.totalorder %s8, 1
    %p67 = por %p65, %p66
    %p68 = scmp.ne.s32.totalorder %s60, %s63
    %p69 = scmp.eq.s32.totalorder %s8, 0
    %p70 = por %p68, %p69
    %p71 = scmp.ne.s32.totalorder %s60, %s63
    %p72 = scmp.eq.s32.totalorder %s13, 1
    %p73 = por %p71, %p72
    %p74 = scmp.ne.s32.totalorder %s63, %s64
    %p75 = scmp.eq.s32.totalorder %s13, 0
    %p76 = por %p74, %p75
    %p77 = scmp.ne.s32.totalorder %s63, %s64
    %p78 = scmp.eq.s32.totalorder %s14, 1
    %p79 = por %p77, %p78
    %p81 = scmp.ne.s32.totalorder %s64, %s80
    %p82 = scmp.eq.s32.totalorder %s14, 0
    %p83 = por %p81, %p82
    %s84 = ssub.s32 %s15, %s27
    %p85 = scmp.eq.s32.totalorder %s84, 0
    %s87 = sadd.s32 %s86, 1
    %s88 = scalar_select %p85, %s86, %s87
    %p91 = pneg %p85
    %p92 = scmp.eq.s32.totalorder %s8, 1
    %p93 = por %p91, %p92
    %p94 = scmp.ne.s32.totalorder %s86, %s89
    %p95 = scmp.eq.s32.totalorder %s8, 0
    %p96 = por %p94, %p95
    %p97 = scmp.ne.s32.totalorder %s86, %s89
    %p98 = scmp.eq.s32.totalorder %s13, 1
    %p99 = por %p97, %p98
    %p100 = scmp.ne.s32.totalorder %s89, %s90
    %p101 = scmp.eq.s32.totalorder %s13, 0
    %p102 = por %p100, %p101
    %p103 = scmp.ne.s32.totalorder %s89, %s90
    %p104 = scmp.eq.s32.totalorder %s14, 1
    %p105 = por %p103, %p104
    %p107 = scmp.ne.s32.totalorder %s90, %s106
    %p108 = scmp.eq.s32.totalorder %s14, 0
    %p109 = por %p107, %p108
    %p110 = scmp.le.s32.totalorder 1, %s8
    %p111 = scmp.lt.s32.totalorder %s8, 3
    %p112 = pnand %p110, %p111
    %p113 = pneg %p112
    // Predicated region
    $region9: #{kl_loss.1} parent=5 // pred_check
      _
    $region10: #{kl_loss.1} parent=5 // pred_check_branch
      %115 = sbr.rel (%p112) target = $region12
    $region11: #{kl_loss.1} parent=5 // pred_region
      %s116 = ssub.s32 %s8, 1
    $region12: #{kl_loss.1} parent=5 // pred_fallthru
      _
    %p117 = scmp.lt.s32.totalorder %s8, 2
    // Predicated region
    $region13: #{kl_loss.1} parent=5 // pred_check
      %p118 = pneg %p117
    $region14: #{kl_loss.1} parent=5 // pred_check_branch
      %120 = sbr.rel (%p118) target = $region16
    $region15: #{kl_loss.1} parent=5 // pred_region
      // Predicated region
      $region17: #{kl_loss.1} parent=15 // pred_check
        %p121 = pneg %p42
      $region18: #{kl_loss.1} parent=15 // pred_check_branch
        %123 = sbr.rel (%p121) target = $region20
      $region19: #{kl_loss.1} parent=15 // pred_region
        %s124 = sadd.s32 %s15, %s16
        %p125 = scmp.lt.s32.totalorder %s124, 1
        %s126 = scalar_select %p125, %s124, 1
        %s127 = smul.addr %s126, 4
        %s128 = smul.addr %s127, 8
        %s129 = scalar_lea.vmem %s0, %s128
        %s130 = sadd.s32 %s15, %s16
      $region20: #{kl_loss.1} parent=15 // pred_fallthru
        _
      // Predicated region
      $region21: #{kl_loss.1} parent=15 // pred_check
        %p131 = pneg %p70
      $region22: #{kl_loss.1} parent=15 // pred_check_branch
        %133 = sbr.rel (%p131) target = $region24
      $region23: #{kl_loss.1} parent=15 // pred_region
        %s134 = sadd.s32 %s15, %s16
        %p135 = scmp.lt.s32.totalorder %s134, 1
        %s136 = scalar_select %p135, %s134, 1
        %s137 = smul.addr %s136, 4
        %s138 = smul.addr %s137, 8
        %s139 = scalar_lea.vmem %s1, %s138
        %s140 = sadd.s32 %s15, %s16
      $region24: #{kl_loss.1} parent=15 // pred_fallthru
        _
    $region16: #{kl_loss.1} parent=5 // pred_fallthru
      _
    %p141 = scmp.le.s32.totalorder 1, %s8
    %p142 = scmp.lt.s32.totalorder %s8, 3
    %p143 = pnand %p141, %p142
    %p144 = pneg %p143
    // Predicated region
    $region25: #{kl_loss.1} parent=5 // pred_check
      _
    $region26: #{kl_loss.1} parent=5 // pred_check_branch
      %146 = sbr.rel (%p143) target = $region28
    $region27: #{kl_loss.1} parent=5 // pred_region
      %s147 = ssub.s32 %s8, 1
      %s148 = sadd.s32 %s17, %s18
      %p149 = scmp.lt.s32.totalorder %s148, 1
      %s150 = scalar_select %p149, %s148, 1
      %s151 = smul.addr %s150, 4
      %s152 = smul.addr %s151, 8
      %s153 = scalar_lea.vmem %s0, %s152
      %p154 = pneg %p48
      %p155 = pneg %p45
      %s156 = sadd.s32 %s17, %s18
      %p157 = scmp.lt.s32.totalorder %s156, 1
      %s158 = scalar_select %p157, %s156, 1
      %s159 = smul.addr %s158, 4
      %s160 = smul.addr %s159, 8
      %s161 = scalar_lea.vmem %s1, %s160
      %p162 = pneg %p76
      %p163 = pneg %p73
      %p164 = pneg %p102
      %p165 = pneg %p99
      %p166 = scmp.lt.s32.totalorder %s17, 1
      %s167 = scalar_select %p166, %s17, 1
      %s168 = smul.addr %s167, 4
      %s169 = smul.addr %s168, 8
      %s170 = scalar_lea.vmem %s2, %s169
      %s171 = sadd.s32 %s17, %s18
      %p172 = scmp.lt.s32.totalorder %s171, 1
      %s173 = scalar_select %p172, %s171, 1
      %s174 = smul.addr %s173, 4
      %s175 = smul.addr %s174, 8
      %s176 = scalar_lea.vmem %s0, %s175
      %s177 = sadd.s32 %s17, %s18
      %s178 = sadd.s32 %s17, %s18
      %p179 = scmp.lt.s32.totalorder %s178, 1
      %s180 = scalar_select %p179, %s178, 1
      %s181 = smul.addr %s180, 4
      %s182 = smul.addr %s181, 8
      %s183 = scalar_lea.vmem %s1, %s182
      %s184 = sadd.s32 %s17, %s18
      %p185 = scmp.lt.s32.totalorder %s17, 1
      %s186 = scalar_select %p185, %s17, 1
      %s187 = smul.addr %s186, 4
      %s188 = smul.addr %s187, 8
      %s189 = scalar_lea.vmem %s2, %s188
      %p190 = scmp.eq.s32.totalorder %s18, 0
      // Predicated region
      $region29: #{kl_loss.1} parent=27 // pred_check
        %p191 = pneg %p190
      $region30: #{kl_loss.1} parent=27 // pred_check_branch
        %193 = sbr.rel (%p191) target = $region32
      $region31: #{kl_loss.1} parent=27 // pred_region
        %194 = vst [vmem:[#allocation2] sm:$0xff] 0.0
        %195 = vst [vmem:[#allocation2 + $0x8] sm:$0xff] 0.0
        %196 = vst [vmem:[#allocation2 + $0x10] sm:$0xff] 0.0
        %197 = vst [vmem:[#allocation2 + $0x18] sm:$0xff] 0.0
      $region32: #{kl_loss.1} parent=27 // pred_fallthru
        _
      %v198 = vld [vmem:[%s176] sm:$0xff]
      %v199 = vld [vmem:[%s176 + $0x8] sm:$0xff]
      %v200 = vld [vmem:[%s176 + $0x10] sm:$0xff]
      %v201 = vld [vmem:[%s176 + $0x18] sm:$0xff]
      %v202 = vld [vmem:[%s183] sm:$0xff]
      %v203 = vld [vmem:[%s183 + $0x8] sm:$0xff]
      %v204 = vld [vmem:[%s183 + $0x10] sm:$0xff]
      %v205 = vld [vmem:[%s183 + $0x18] sm:$0xff]
      %v206 = vmul.f32 %v202, 1.442695
      %v207 = vpow.pop %v206
      %v208 = vmul.f32 %v203, 1.442695
      %v209 = vpow.pop %v208
      %v210 = vmul.f32 %v204, 1.442695
      %v211 = vpow.pop %v210
      %v212 = vmul.f32 %v205, 1.442695
      %v213 = vpow.pop %v212
      %v214 = vmul.f32 %v198, %v198
      %v215 = vmul.f32 %v199, %v199
      %v216 = vmul.f32 %v200, %v200
      %v217 = vmul.f32 %v201, %v201
      %v218 = vadd.f32 %v207, %v214
      %v219 = vadd.f32 %v209, %v215
      %v220 = vadd.f32 %v211, %v216
      %v221 = vadd.f32 %v213, %v217
      %v222 = vsub.f32 %v218, %v202
      %v223 = vsub.f32 %v219, %v203
      %v224 = vsub.f32 %v220, %v204
      %v225 = vsub.f32 %v221, %v205
      %v226 = vld [vmem:[#allocation2] sm:$0xff]
      %v227 = vld [vmem:[#allocation2 + $0x8] sm:$0xff]
      %v228 = vld [vmem:[#allocation2 + $0x10] sm:$0xff]
      %v229 = vld [vmem:[#allocation2 + $0x18] sm:$0xff]
      %v230 = vadd.f32 %v222, 0.0
      %v231 = vadd.f32 %v223, 0.0
      %v232 = vadd.f32 %v224, 0.0
      %v233 = vadd.f32 %v225, 0.0
      %v234 = vadd.f32 %v226, %v230
      %v235 = vadd.f32 %v227, %v231
      %v236 = vadd.f32 %v228, %v232
      %v237 = vadd.f32 %v229, %v233
      %238 = vst [vmem:[#allocation2] sm:$0xff] %v234
      %239 = vst [vmem:[#allocation2 + $0x8] sm:$0xff] %v235
      %240 = vst [vmem:[#allocation2 + $0x10] sm:$0xff] %v236
      %241 = vst [vmem:[#allocation2 + $0x18] sm:$0xff] %v237
      // Predicated region
      $region33: #{kl_loss.1} parent=27 // pred_check
        %p242 = pneg %p190
      $region34: #{kl_loss.1} parent=27 // pred_check_branch
        %244 = sbr.rel (%p242) target = $region36
      $region35: #{kl_loss.1} parent=27 // pred_region
        %v245 = vld [vmem:[#allocation2] sm:$0xff]
        %v246 = vld [vmem:[#allocation2 + $0x8] sm:$0xff]
        %v247 = vld [vmem:[#allocation2 + $0x10] sm:$0xff]
        %v248 = vld [vmem:[#allocation2 + $0x18] sm:$0xff]
        %249 = vst [vmem:[%s189] sm:$0xff] %v245
        %250 = vst [vmem:[%s189 + $0x8] sm:$0xff] %v246
        %251 = vst [vmem:[%s189 + $0x10] sm:$0xff] %v247
        %252 = vst [vmem:[%s189 + $0x18] sm:$0xff] %v248
      $region36: #{kl_loss.1} parent=27 // pred_fallthru
        _
      %p253 = scmp.lt.s32.totalorder %s17, 1
      %s254 = scalar_select %p253, %s17, 1
      %s255 = smul.addr %s254, 4
      %s256 = smul.addr %s255, 8
      %s257 = scalar_lea.vmem %s2, %s256
      // Predicated region
      $region37: #{kl_loss.1} parent=27 // pred_check
        %p258 = pneg %p99
      $region38: #{kl_loss.1} parent=27 // pred_check_branch
        %260 = sbr.rel (%p258) target = $region40
      $region39: #{kl_loss.1} parent=27 // pred_region
        _
      $region40: #{kl_loss.1} parent=27 // pred_fallthru
        _
    $region28: #{kl_loss.1} parent=5 // pred_fallthru
      _
    %p261 = scmp.le.s32.totalorder 2, %s8
    // Predicated region
    $region41: #{kl_loss.1} parent=5 // pred_check
      %p262 = pneg %p261
    $region42: #{kl_loss.1} parent=5 // pred_check_branch
      %264 = sbr.rel (%p262) target = $region44
    $region43: #{kl_loss.1} parent=5 // pred_region
      %s265 = ssub.s32 %s8, 2
      // Predicated region
      $region45: #{kl_loss.1} parent=43 // pred_check
        %p266 = pneg %p105
      $region46: #{kl_loss.1} parent=43 // pred_check_branch
        %268 = sbr.rel (%p266) target = $region48
      $region47: #{kl_loss.1} parent=43 // pred_region
        %p269 = scmp.lt.s32.totalorder %s19, 1
        %s270 = scalar_select %p269, %s19, 1
        %s271 = smul.addr %s270, 4
        %s272 = smul.addr %s271, 8
        %s273 = scalar_lea.vmem %s2, %s272
      $region48: #{kl_loss.1} parent=43 // pred_fallthru
        _
    $region44: #{kl_loss.1} parent=5 // pred_fallthru
      _
  $region6: #{kl_loss.1} parent=0 // loop_footer
    %s12 = sadd.s32 1, %s8
  $region7: #{kl_loss.1} parent=0 // loop_footer_branch
    %7 = sbr.rel target = $region3
  $region8: #{kl_loss.1} parent=0 // loop_exit
    _

</llo_original>
